<compile_context>
chip_gen: v7x
topology: tpu7x:2x2x1
jax: 0.10.0
libtpu: 0.0.40
codegen_flags: <defaults>
</compile_context>

<pallas_src>
import jax
import jax.numpy as jnp
from jax.experimental import pallas as pl
from jax.experimental.pallas import tpu as pltpu


class Config:
    model_dim = 128            # multiple of 128 -> lane-dense output stores


# ----------------------------- Pallas kernel ------------------------------
def pooler_kernel(hidden_ref, w_ref, b_ref, out_ref):
    """LongformerPooler: tanh(hidden[:, 0] @ W + b), fully fused."""
    x = hidden_ref[:, 0, :]                                   # (B, D) first-token slice (in VMEM)
    y = jnp.dot(x, w_ref[...], preferred_element_type=jnp.float32) + b_ref[...]
    out_ref[...] = jnp.tanh(y).astype(out_ref.dtype)          # tanh -> EUP slot


# ------------------------------- wrapper ----------------------------------
def longformer_pooler(hidden_states, w, b):
    B, S, D = hidden_states.shape
    return pl.pallas_call(
        pooler_kernel,
        out_shape=jax.ShapeDtypeStruct((B, D), jnp.float32),
        in_specs=[
            pl.BlockSpec(memory_space=pltpu.MemorySpace.VMEM),   # hidden_states (B, S, D)
            pl.BlockSpec(memory_space=pltpu.MemorySpace.VMEM),   # W (D, D)
            pl.BlockSpec(memory_space=pltpu.MemorySpace.VMEM),   # b (1, D)
        ],
        out_specs=pl.BlockSpec(memory_space=pltpu.MemorySpace.VMEM),
    )(hidden_states, w, b)


# --------------------------------- main ------------------------------------
if __name__ == "__main__":
    cfg = Config()
    key = jax.random.PRNGKey(0)
    k1, k2, k3 = jax.random.split(key, 3)

    B, S, D = 8, 16, cfg.model_dim
    hidden_states = jax.random.normal(k1, (B, S, D), dtype=jnp.float32)
    w = jax.random.normal(k2, (D, D), dtype=jnp.float32) * 0.02
    b = jax.random.normal(k3, (1, D), dtype=jnp.float32) * 0.02

    out = longformer_pooler(hidden_states, w, b)
    out = jax.block_until_ready(out)

    # plain-JAX reference of the PyTorch module semantics
    ref = jnp.tanh(hidden_states[:, 0, :] @ w + b)

    assert out.shape == (B, D)
    assert jnp.all(jnp.isfinite(out))
    assert jnp.allclose(out, ref, atol=5e-3, rtol=5e-3)
    print("KERNEL_OK")
</pallas_src>

<mosaic_0001>
module attributes {stable_mosaic.version = 11 : i64} {
  func.func @pooler_kernel(%arg0: memref<8x16x128xf32, #tpu.memory_space<vmem>>, %arg1: memref<128x128xf32, #tpu.memory_space<vmem>>, %arg2: memref<1x128xf32, #tpu.memory_space<vmem>>, %arg3: memref<8x128xf32, #tpu.memory_space<vmem>>) attributes {dimension_semantics = [], scalar_prefetch = 0 : i64, scratch_operands = 0 : i64, tpu.core_type = #tpu.core_type<tc>} {
    %c0 = arith.constant 0 : index
    %c0_0 = arith.constant 0 : index
    %c0_1 = arith.constant 0 : index
    %0 = vector.load %arg0[%c0, %c0_0, %c0_1] : memref<8x16x128xf32, #tpu.memory_space<vmem>>, vector<8x1x128xf32>
    %1 = vector.shape_cast %0 : vector<8x1x128xf32> to vector<8x128xf32>
    %c0_2 = arith.constant 0 : index
    %c0_3 = arith.constant 0 : index
    %2 = vector.load %arg1[%c0_2, %c0_3] : memref<128x128xf32, #tpu.memory_space<vmem>>, vector<128x128xf32>
    %cst = arith.constant dense<0.000000e+00> : vector<8x128xf32>
    %3 = tpu.matmul %1, %2, %cst {dimension_numbers = #tpu.dot_dimension_numbers<[1], [0], [0], [1], [0, 0, 1, 1], [], []>} : vector<8x128xf32>, vector<128x128xf32>, vector<8x128xf32> -> vector<8x128xf32>
    %c0_4 = arith.constant 0 : index
    %c0_5 = arith.constant 0 : index
    %4 = vector.load %arg2[%c0_4, %c0_5] : memref<1x128xf32, #tpu.memory_space<vmem>>, vector<1x128xf32>
    %5 = vector.broadcast %4 : vector<1x128xf32> to vector<8x128xf32>
    %6 = arith.addf %3, %5 : vector<8x128xf32>
    %7 = math.tanh %6 : vector<8x128xf32>
    %c0_6 = arith.constant 0 : index
    %c0_7 = arith.constant 0 : index
    %8 = vector.load %arg3[%c0_6, %c0_7] : memref<8x128xf32, #tpu.memory_space<vmem>>, vector<8x128xf32>
    tpu.vector_store %arg3[%c0_6, %c0_7], %7 {strides = array<i32>} : memref<8x128xf32, #tpu.memory_space<vmem>>, vector<8x128xf32>,
    return
  }
}

</mosaic_0001>

<llo_original>
// kernel: tpu_custom_call.1
$region0: #{tpu_custom_call.1}
  #allocation0 [shape = 'u32[]', space=smem, size = 0x4, offset = 0x4, fixed_abs, tag = 'smem constant byte address 0x4 - core index']
  #allocation1 [shape = 'u32[144,128]{1,0:T(1,128)}', space=vmem, size = 0x12000, scoped, tag = 'internal scratch']
  %s0 = inlined_call_operand.hbm [shape: f32[8,16,128], index: 0, kind: input, shape index: {}]
  %s1 = inlined_call_operand.hbm [shape: f32[128,128], index: 1, kind: input, shape index: {}]
  %s2 = inlined_call_operand.vmem [shape: f32[1,128], index: 2, kind: input, shape index: {}]
  %s3 = inlined_call_operand.hbm [shape: f32[8,128], index: 3, kind: output, shape index: {}]
  %s4 = sld [smem:[#allocation0]]
  $region30: #{tpu_custom_call.1} parent=0
    _
  %s6 = ssub.s32 1, %s4
  %s7 = scalar_select 0, %s6, %s4
  $region1: #{tpu_custom_call.1} parent=0
    #allocation2 [shape = 'u8[65536]{0}', space=vmem, size = 0x10000, scoped, tag = 'input window, operand 0, single buffered']
    #allocation3 [shape = 's32[1]{0}', space=sflag, size = 0x4, scoped, tag = 'scoped memory for tpu_custom_call.1']
    #allocation4 [shape = 's32[1]{0}', space=sflag, size = 0x4, scoped, tag = 'scoped memory for tpu_custom_call.1']
    #allocation5 [shape = 'u8[65536]{0}', space=vmem, size = 0x10000, scoped, tag = 'input window, operand 1, single buffered']
    #allocation6 [shape = 's32[1]{0}', space=sflag, size = 0x4, scoped, tag = 'scoped memory for tpu_custom_call.1']
    #allocation7 [shape = 'u8[4096]{0}', space=vmem, size = 0x1000, scoped, tag = 'output window, operand 0, single buffered']
    %8 = vsyncpa [#allocation3], 0
    %9 = vsyncpa [#allocation6], 0
    %10 = vsyncpa [#allocation4], 0
    // Predicated region
    $region2: #{tpu_custom_call.1} parent=1 // pred_check
      _
    $region3: #{tpu_custom_call.1} parent=1 // pred_check_branch
      %12 = sbr.rel (0) target = $region5
    $region4: #{tpu_custom_call.1} parent=1 // pred_region
      %s14 = ssub.s32 2048, 2048
      %15 = vsyncadd [#allocation3], %s14
      %s16 = sshll.u32 [#allocation2], 4
      %s17 = int_to_ptr.vmem [resolvable:$true] %s16
      %22 = dma.hbm_to_vmem [thread:$0]  %s0, 2048, %s17, [#allocation3], 128, 128, 8
    $region5: #{tpu_custom_call.1} parent=1 // pred_fallthru
      _
    // Predicated region
    $region6: #{tpu_custom_call.1} parent=1 // pred_check
      _
    $region7: #{tpu_custom_call.1} parent=1 // pred_check_branch
      %24 = sbr.rel (0) target = $region9
    $region8: #{tpu_custom_call.1} parent=1 // pred_region
      %s26 = ssub.s32 2048, 2048
      %27 = vsyncadd [#allocation6], %s26
      %s28 = sshll.u32 [#allocation5], 4
      %s29 = int_to_ptr.vmem [resolvable:$true] %s28
      %34 = dma.hbm_to_vmem [thread:$0]  %s1, 2048, %s29, [#allocation6], 128, 128, 8
    $region9: #{tpu_custom_call.1} parent=1 // pred_fallthru
      _
    // Predicated region
    $region10: #{tpu_custom_call.1} parent=1 // pred_check
      _
    $region11: #{tpu_custom_call.1} parent=1 // pred_check_branch
      %36 = sbr.rel (0) target = $region13
    $region12: #{tpu_custom_call.1} parent=1 // pred_region
      _
    $region13: #{tpu_custom_call.1} parent=1 // pred_fallthru
      _
    // Predicated region
    $region14: #{tpu_custom_call.1} parent=1 // pred_check
      _
    $region15: #{tpu_custom_call.1} parent=1 // pred_check_branch
      %38 = sbr.rel (0) target = $region17
    $region16: #{tpu_custom_call.1} parent=1 // pred_region
      %39 = dma.done [#allocation3], 2048
    $region17: #{tpu_custom_call.1} parent=1 // pred_fallthru
      _
    // Predicated region
    $region18: #{tpu_custom_call.1} parent=1 // pred_check
      _
    $region19: #{tpu_custom_call.1} parent=1 // pred_check_branch
      %41 = sbr.rel (0) target = $region21
    $region20: #{tpu_custom_call.1} parent=1 // pred_region
      %42 = dma.done [#allocation6], 2048
    $region21: #{tpu_custom_call.1} parent=1 // pred_fallthru
      _
    %v43 = vld [vmem:[#allocation2] sm:$0x1]
    %v44 = vld [vmem:[#allocation2 + $0x10] sm:$0x1]
    %v45 = vld [vmem:[#allocation2 + $0x20] sm:$0x1]
    %v46 = vld [vmem:[#allocation2 + $0x30] sm:$0x1]
    %v47 = vld [vmem:[#allocation2 + $0x40] sm:$0x1]
    %v48 = vld [vmem:[#allocation2 + $0x50] sm:$0x1]
    %v49 = vld [vmem:[#allocation2 + $0x60] sm:$0x1]
    %v50 = vld [vmem:[#allocation2 + $0x70] sm:$0x1]
    %v51 = vld [vmem:[#allocation5] sm:$0xff]
    %v52 = vld [vmem:[#allocation5 + $0x8] sm:$0xff]
    %v53 = vld [vmem:[#allocation5 + $0x10] sm:$0xff]
    %v54 = vld [vmem:[#allocation5 + $0x18] sm:$0xff]
    %v55 = vld [vmem:[#allocation5 + $0x20] sm:$0xff]
    %v56 = vld [vmem:[#allocation5 + $0x28] sm:$0xff]
    %v57 = vld [vmem:[#allocation5 + $0x30] sm:$0xff]
    %v58 = vld [vmem:[#allocation5 + $0x38] sm:$0xff]
    %v59 = vld [vmem:[#allocation5 + $0x40] sm:$0xff]
    %v60 = vld [vmem:[#allocation5 + $0x48] sm:$0xff]
    %v61 = vld [vmem:[#allocation5 + $0x50] sm:$0xff]
    %v62 = vld [vmem:[#allocation5 + $0x58] sm:$0xff]
    %v63 = vld [vmem:[#allocation5 + $0x60] sm:$0xff]
    %v64 = vld [vmem:[#allocation5 + $0x68] sm:$0xff]
    %v65 = vld [vmem:[#allocation5 + $0x70] sm:$0xff]
    %v66 = vld [vmem:[#allocation5 + $0x78] sm:$0xff]
    %v67 = vld [vmem:[%s2] sm:$0x1]
    %v69 = vlaneseq
    %v70 = vshrl.u32 %v69, 7
    %v71 = vsub.s32 0, %v70
    %v72 = vrot.slane %v67, %v71
    %v82 = vrot.slane %v44, 7
    %vm83 = vcmask 1041409
    %v84 = vsel %vm83, %v82, %v43
    %v85 = vrot.slane %v45, 6
    %vm86 = vcmask 1042434
    %v87 = vsel %vm86, %v85, %v84
    %v88 = vrot.slane %v46, 5
    %vm89 = vcmask 1043459
    %v90 = vsel %vm89, %v88, %v87
    %v91 = vrot.slane %v47, 4
    %vm92 = vcmask 1044484
    %v93 = vsel %vm92, %v91, %v90
    %v94 = vrot.slane %v48, 3
    %vm95 = vcmask 1045509
    %v96 = vsel %vm95, %v94, %v93
    %v97 = vrot.slane %v49, 2
    %vm98 = vcmask 1046534
    %v99 = vsel %vm98, %v97, %v96
    %v100 = vrot.slane %v50, 1
    %vm101 = vcmask 1047559
    %v102 = vsel %vm101, %v100, %v99
    %104 = vmatprep.subr.mxu0 0.0
    %105 = vmatpush1.msra.mxu0 %v51
    %106 = vmatprep.subr.mxu0 0.0
    %107 = vmatpush1.msra.mxu0 %v52
    %108 = vmatprep.subr.mxu0 0.0
    %109 = vmatpush1.msra.mxu0 %v53
    %110 = vmatprep.subr.mxu0 0.0
    %111 = vmatpush1.msra.mxu0 %v54
    %112 = vmatprep.subr.mxu0 0.0
    %113 = vmatpush1.msra.mxu0 %v55
    %114 = vmatprep.subr.mxu0 0.0
    %115 = vmatpush1.msra.mxu0 %v56
    %116 = vmatprep.subr.mxu0 0.0
    %117 = vmatpush1.msra.mxu0 %v57
    %118 = vmatprep.subr.mxu0 0.0
    %119 = vmatpush1.msra.mxu0 %v58
    %120 = vmatprep.subr.mxu0 0.0
    %121 = vmatpush1.msra.mxu0 %v59
    %122 = vmatprep.subr.mxu0 0.0
    %123 = vmatpush1.msra.mxu0 %v60
    %124 = vmatprep.subr.mxu0 0.0
    %125 = vmatpush1.msra.mxu0 %v61
    %126 = vmatprep.subr.mxu0 0.0
    %127 = vmatpush1.msra.mxu0 %v62
    %128 = vmatprep.subr.mxu0 0.0
    %129 = vmatpush1.msra.mxu0 %v63
    %130 = vmatprep.subr.mxu0 0.0
    %131 = vmatpush1.msra.mxu0 %v64
    %132 = vmatprep.subr.mxu0 0.0
    %133 = vmatpush1.msra.mxu0 %v65
    %134 = vmatprep.subr.mxu0 0.0
    %135 = vmatpush1.msra.mxu0 %v66
    %136 = vmatprep.subr.mxu0 0.0
    %137 = vmatpush1.msra.mxu0 0.0
    %138 = vmatprep.subr.mxu0 0.0
    %139 = vmatpush1.msra.mxu0 0.0
    %140 = vmatprep.subr.mxu0 0.0
    %141 = vmatpush1.msra.mxu0 0.0
    %142 = vmatprep.subr.mxu0 0.0
    %143 = vmatpush1.msra.mxu0 0.0
    %144 = vmatprep.subr.mxu0 0.0
    %145 = vmatpush1.msra.mxu0 0.0
    %146 = vmatprep.subr.mxu0 0.0
    %147 = vmatpush1.msra.mxu0 0.0
    %148 = vmatprep.subr.mxu0 0.0
    %149 = vmatpush1.msra.mxu0 0.0
    %150 = vmatprep.subr.mxu0 0.0
    %151 = vmatpush1.msra.mxu0 0.0
    %152 = vmatprep.subr.mxu0 0.0
    %153 = vmatpush1.msra.mxu0 0.0
    %154 = vmatprep.subr.mxu0 0.0
    %155 = vmatpush1.msra.mxu0 0.0
    %156 = vmatprep.subr.mxu0 0.0
    %157 = vmatpush1.msra.mxu0 0.0
    %158 = vmatprep.subr.mxu0 0.0
    %159 = vmatpush1.msra.mxu0 0.0
    %160 = vmatprep.subr.mxu0 0.0
    %161 = vmatpush1.msra.mxu0 0.0
    %162 = vmatprep.subr.mxu0 0.0
    %163 = vmatpush1.msra.mxu0 0.0
    %164 = vmatprep.subr.mxu0 0.0
    %165 = vmatpush1.msra.mxu0 0.0
    %166 = vmatprep.subr.mxu0 0.0
    %167 = vmatpush1.msra.mxu0 0.0
    %168 = vmatprep.mubr.f32.mxu0 0.0
    %169 = vmatmul.mubr.f32.gmra.mrb[0].mxu0 %v102
    %v170 = vpop.f32.mrb[0].mxu0
    %v171 = vadd.f32 %v72, %v170
    %v172 = vpop.f32.mrb[0].mxu0
    %173 = vdwg.mxu0
    %v174 = vtanh.pop %v171
    %175 = vst [vmem:[#allocation7] sm:$0xff] %v174
    // Predicated region
    $region22: #{tpu_custom_call.1} parent=1 // pred_check
      _
    $region23: #{tpu_custom_call.1} parent=1 // pred_check_branch
      %177 = sbr.rel (0) target = $region25
    $region24: #{tpu_custom_call.1} parent=1 // pred_region
      %s179 = ssub.s32 128, 128
      %180 = vsyncadd [#allocation4], %s179
      %s182 = sshll.u32 [#allocation7], 4
      %s183 = int_to_ptr.vmem [resolvable:$true] %s182
      %185 = dma.vmem_to_hbm [thread:$0]  %s183, 128, %s3, [#allocation4]
    $region25: #{tpu_custom_call.1} parent=1 // pred_fallthru
      _
    // Predicated region
    $region26: #{tpu_custom_call.1} parent=1 // pred_check
      _
    $region27: #{tpu_custom_call.1} parent=1 // pred_check_branch
      %187 = sbr.rel (0) target = $region29
    $region28: #{tpu_custom_call.1} parent=1 // pred_region
      %188 = dma.done [#allocation4], 128
    $region29: #{tpu_custom_call.1} parent=1 // pred_fallthru
      _
    %189 = vsyncpa [#allocation3], 1
    %190 = vsyncpa [#allocation6], 1
    %191 = vsyncpa [#allocation4], 1

</llo_original>
